<compile_context>
chip_gen: v5e
topology: v5e:2x2
jax: 0.10.0
libtpu: 0.0.40
codegen_flags: <defaults>
</compile_context>

<pallas_src>
import jax
import jax.numpy as jnp
from jax import lax
from jax.experimental import pallas as pl
from jax.experimental.pallas import tpu as pltpu

_SUB = 16                              # sublane extent of one group (native f32 & bf16 tile)
_LANES = 128                           # lane extent
_GROUP = _SUB * _LANES                 # 2048 elements per group
_SMALL_N = 1 << 16                     # below this, plain-JAX fast path
_TARGET_BLOCK_BYTES = 4 * 1024 * 1024  # ~4 MiB per streamed input block


def _tpu_config():
    """Generation-aware (num_shards, vmem_limit_bytes)."""
    kind = ""
    try:
        dev = jax.devices()[0]
        kind = (getattr(dev, "device_kind", "") or "").lower()
    except Exception:
        pass
    is_v7 = ("v7" in kind) or ("7x" in kind)   # 2 TensorCores, 64 MiB VMEM per TC
    num_shards = 2 if is_v7 else 1             # shard axis buys nothing on 1-TC chips
    vmem_limit = (48 if is_v7 else 64) * 1024 * 1024
    return num_shards, vmem_limit


def _make_kernel(groups_total, tile_groups, tiles_per_shard):
    def kernel(shift_ref, x_ref, y_ref, sse_ref, sy_ref, syy_ref):
        c = pl.program_id(0)   # shard axis (core-parallel on v7x)
        i = pl.program_id(1)   # streaming / reduction axis

        @pl.when(i == 0)
        def _init():
            sse_ref[...] = jnp.zeros_like(sse_ref)
            sy_ref[...] = jnp.zeros_like(sy_ref)
            syy_ref[...] = jnp.zeros_like(syy_ref)

        # Logical (unclamped) first group of this block; mask groups >= groups_total
        # so boundary-block padding never contaminates the sums.
        start = (c * tiles_per_shard + i) * tile_groups
        gid = start + lax.broadcasted_iota(jnp.int32, x_ref.shape, 0)
        valid = gid < groups_total

        xv = x_ref[...].astype(jnp.float32)
        yv = y_ref[...].astype(jnp.float32)
        shift = shift_ref[0]   # y[0]; stabilizes the one-pass variance identity

        d = jnp.where(valid, xv - yv, 0.0)
        yc = jnp.where(valid, yv - shift, 0.0)

        # (16,128) vector accumulators in the resident output blocks.  The axis-0
        # reductions are pure cross-vreg VPU adds (no per-step XLU / SMEM scalar
        # dependency); final cross-lane reduce happens in the JAX wrapper.
        sse_ref[0] = sse_ref[0] + jnp.sum(d * d, axis=0)
        sy_ref[0] = sy_ref[0] + jnp.sum(yc, axis=0)
        syy_ref[0] = syy_ref[0] + jnp.sum(yc * yc, axis=0)

    return kernel


def my_loss(x, y):
    """Pallas equivalent of myLoss.forward with only_sse = 1."""
    x = jnp.asarray(x)
    y = jnp.asarray(y)
    assert x.shape == y.shape
    n = x.size
    fx = x.reshape(-1)
    fy = y.reshape(-1)

    # ---- small-n fast path: pallas_call fixed overhead would dominate --------
    if n < _SMALL_N:
        xf = fx.astype(jnp.float32)
        yf = fy.astype(jnp.float32)
        sse = jnp.sum((xf - yf) ** 2)
        vy = yf - jnp.mean(yf)
        sst = jnp.sum(vy * vy)
        return sse / sst

    num_shards, vmem_limit = _tpu_config()

    groups = n // _GROUP               # complete 2048-element groups
    n_main = groups * _GROUP

    # shift = y[0] for the numerically-stable shifted variance (SMEM scalar input)
    shift = fy[:1].astype(jnp.float32)

    # ---- balanced, dtype-aware tile sizing (all static Python ints) ----------
    itemsize = max(x.dtype.itemsize, y.dtype.itemsize)
    max_tg = max(1, _TARGET_BLOCK_BYTES // (_GROUP * itemsize))   # groups per ~4 MiB block
    gps = pl.cdiv(groups, num_shards)                             # groups per shard
    tiles_per_shard = max(1, pl.cdiv(gps, max_tg))
    tile_groups = pl.cdiv(gps, tiles_per_shard)                   # balanced tile size
    last_block = pl.cdiv(groups, tile_groups) - 1                 # clamp target for index_map

    def _main_view(f):
        # TODO(synk): when n % 2048 != 0 this prefix slice materializes a copy;
        # the < 2048-element tail itself is summed in plain JAX below.
        fm = f if n_main == n else f[:n_main]
        return fm.reshape(groups, _SUB, _LANES)    # free bitcast reshape

    xm = _main_view(fx)
    ym = _main_view(fy)

    def in_map(c, i):
        # Clamp so the DMA window always stays inside the array; the in-kernel
        # mask (which uses the *unclamped* index) zeroes any re-read data.
        return (jnp.minimum(c * tiles_per_shard + i, last_block), 0, 0)

    in_block = pl.BlockSpec((tile_groups, _SUB, _LANES), in_map)
    out_block = pl.BlockSpec((1, _SUB, _LANES), lambda c, i: (c, 0, 0))
    part_shape = jax.ShapeDtypeStruct((num_shards, _SUB, _LANES), jnp.float32)

    if num_shards > 1:
        shard_sem = getattr(pltpu, "CORE_PARALLEL", pltpu.PARALLEL)  # split across v7x TCs
    else:
        shard_sem = pltpu.ARBITRARY

    bytes_per_elem = x.dtype.itemsize + y.dtype.itemsize
    cost = pl.CostEstimate(
        flops=8 * n_main,
        transcendentals=0,
        bytes_accessed=n_main * bytes_per_elem + 3 * num_shards * _GROUP * 4,
    )

    kernel = _make_kernel(groups, tile_groups, tiles_per_shard)

    sse_p, sy_p, syy_p = pl.pallas_call(
        kernel,
        out_shape=(part_shape, part_shape, part_shape),
        grid_spec=pltpu.PrefetchScalarGridSpec(
            num_scalar_prefetch=0,
            grid=(num_shards, tiles_per_shard),
            in_specs=[
                pl.BlockSpec(memory_space=pltpu.MemorySpace.SMEM),  # shift scalar
                in_block,                                           # x blocks
                in_block,                                           # y blocks
            ],
            out_specs=(out_block, out_block, out_block),
        ),
        compiler_params=pltpu.CompilerParams(
            dimension_semantics=(shard_sem, pltpu.ARBITRARY),
            vmem_limit_bytes=vmem_limit,
        ),
        cost_estimate=cost,
    )(shift, xm, ym)

    # ---- tiny final combine in plain JAX -------------------------------------
    sse = jnp.sum(sse_p)
    sy = jnp.sum(sy_p)
    syy = jnp.sum(syy_p)

    if n_main != n:  # ragged tail (< 2048 elements)
        tx = fx[n_main:].astype(jnp.float32)
        ty = fy[n_main:].astype(jnp.float32)
        s = shift[0]
        td = tx - ty
        tc = ty - s
        sse = sse + jnp.sum(td * td)
        sy = sy + jnp.sum(tc)
        syy = syy + jnp.sum(tc * tc)

    # shifted one-pass identity: sst = sum((y-y0)^2) - (sum(y-y0))^2 / n
    # TODO(synk): float32(n) loses integer precision above 2^24 elements (tiny sst bias).
    sst = syy - (sy * sy) / jnp.float32(n)
    return sse / sst  # matches torch: inf/nan when y is constant (sst == 0)


if __name__ == "__main__":
    def ref_loss(x, y):
        xf = x.astype(jnp.float32)
        yf = y.astype(jnp.float32)
        vy = yf - jnp.mean(yf)
        return jnp.sum((xf - yf) ** 2) / jnp.sum(vy ** 2)

    key = jax.random.PRNGKey(0)
    shapes = [
        (2, 4, 16, 16),    # tiny -> plain-JAX fast path
        (2, 4, 96, 96),    # kernel path, 2048-aligned (zero-copy)
        (2, 4, 100, 100),  # kernel path, masked last block + ragged JAX tail
    ]
    for shape in shapes:
        key, kx, ky = jax.random.split(key, 3)
        x = jax.random.normal(kx, shape, dtype=jnp.float32)
        y = jax.random.normal(ky, shape, dtype=jnp.float32) + 0.5  # nonzero mean
        loss = my_loss(x, y)
        jax.block_until_ready(loss)
        ref = ref_loss(x, y)
        assert jnp.allclose(loss, ref, rtol=1e-4, atol=1e-5), (shape, loss, ref)

    print("KERNEL_OK")
</pallas_src>

<mosaic_0001>
module attributes {stable_mosaic.version = 11 : i64} {
  func.func @kernel(%arg0: i32, %arg1: i32, %arg2: memref<1xf32, #tpu.memory_space<smem>>, %arg3: memref<36x16x128xf32, #tpu.memory_space<vmem>>, %arg4: memref<36x16x128xf32, #tpu.memory_space<vmem>>, %arg5: memref<1x16x128xf32, #tpu.memory_space<vmem>>, %arg6: memref<1x16x128xf32, #tpu.memory_space<vmem>>, %arg7: memref<1x16x128xf32, #tpu.memory_space<vmem>>) attributes {dimension_semantics = [#tpu.dimension_semantics<arbitrary>, #tpu.dimension_semantics<arbitrary>], iteration_bounds = array<i64: 1, 1>, scalar_prefetch = 0 : i64, scratch_operands = 0 : i64, tpu.core_type = #tpu.core_type<tc>, window_params = [{transform_indices = @transform_0, window_bounds = array<i64: 1>}, {transform_indices = @transform_1, window_bounds = array<i64: 36, 16, 128>}, {transform_indices = @transform_2, window_bounds = array<i64: 36, 16, 128>}, {transform_indices = @transform_3, window_bounds = array<i64: 1, 16, 128>}, {transform_indices = @transform_4, window_bounds = array<i64: 1, 16, 128>}, {transform_indices = @transform_5, window_bounds = array<i64: 1, 16, 128>}]} {
    %c0_i32 = arith.constant 0 : i32
    %0 = arith.cmpi eq, %arg1, %c0_i32 : i32
    %1 = arith.extui %0 : i1 to i32
    %c0_i32_0 = arith.constant 0 : i32
    %2 = arith.cmpi ne, %1, %c0_i32_0 : i32
    scf.if %2 {
      %cst_30 = arith.constant 0.000000e+00 : f32
      %44 = vector.broadcast %cst_30 : f32 to vector<1x16x128xf32>
      %c0_31 = arith.constant 0 : index
      %c0_32 = arith.constant 0 : index
      %c0_33 = arith.constant 0 : index
      %45 = vector.load %arg5[%c0_31, %c0_32, %c0_33] : memref<1x16x128xf32, #tpu.memory_space<vmem>>, vector<1x16x128xf32>
      tpu.vector_store %arg5[%c0_31, %c0_32, %c0_33], %44 {strides = array<i32>} : memref<1x16x128xf32, #tpu.memory_space<vmem>>, vector<1x16x128xf32>,
      %cst_34 = arith.constant 0.000000e+00 : f32
      %46 = vector.broadcast %cst_34 : f32 to vector<1x16x128xf32>
      %c0_35 = arith.constant 0 : index
      %c0_36 = arith.constant 0 : index
      %c0_37 = arith.constant 0 : index
      %47 = vector.load %arg6[%c0_35, %c0_36, %c0_37] : memref<1x16x128xf32, #tpu.memory_space<vmem>>, vector<1x16x128xf32>
      tpu.vector_store %arg6[%c0_35, %c0_36, %c0_37], %46 {strides = array<i32>} : memref<1x16x128xf32, #tpu.memory_space<vmem>>, vector<1x16x128xf32>,
      %cst_38 = arith.constant 0.000000e+00 : f32
      %48 = vector.broadcast %cst_38 : f32 to vector<1x16x128xf32>
      %c0_39 = arith.constant 0 : index
      %c0_40 = arith.constant 0 : index
      %c0_41 = arith.constant 0 : index
      %49 = vector.load %arg7[%c0_39, %c0_40, %c0_41] : memref<1x16x128xf32, #tpu.memory_space<vmem>>, vector<1x16x128xf32>
      tpu.vector_store %arg7[%c0_39, %c0_40, %c0_41], %48 {strides = array<i32>} : memref<1x16x128xf32, #tpu.memory_space<vmem>>, vector<1x16x128xf32>,
    } else {
    }
    %c1_i32 = arith.constant 1 : i32
    %3 = arith.muli %arg0, %c1_i32 : i32
    %4 = arith.addi %3, %arg1 : i32
    %c36_i32 = arith.constant 36 : i32
    %5 = arith.muli %4, %c36_i32 : i32
    %6 = tpu.iota {dimensions = array<i32: 0>} : vector<36x16x128xi32>
    %7 = vector.broadcast %5 : i32 to vector<36x16x128xi32>
    %8 = arith.addi %7, %6 : vector<36x16x128xi32>
    %c36_i32_1 = arith.constant 36 : i32
    %9 = vector.broadcast %c36_i32_1 : i32 to vector<36x16x128xi32>
    %10 = arith.cmpi slt, %8, %9 : vector<36x16x128xi32>
    %c0 = arith.constant 0 : index
    %c0_2 = arith.constant 0 : index
    %c0_3 = arith.constant 0 : index
    %11 = vector.load %arg3[%c0, %c0_2, %c0_3] : memref<36x16x128xf32, #tpu.memory_space<vmem>>, vector<36x16x128xf32>
    %c0_4 = arith.constant 0 : index
    %c0_5 = arith.constant 0 : index
    %c0_6 = arith.constant 0 : index
    %12 = vector.load %arg4[%c0_4, %c0_5, %c0_6] : memref<36x16x128xf32, #tpu.memory_space<vmem>>, vector<36x16x128xf32>
    %c0_7 = arith.constant 0 : index
    %13 = memref.load %arg2[%c0_7] : memref<1xf32, #tpu.memory_space<smem>>
    %14 = arith.subf %11, %12 : vector<36x16x128xf32>
    %cst = arith.constant 0.000000e+00 : f32
    %15 = vector.broadcast %cst : f32 to vector<36x16x128xf32>
    %16 = arith.select %10, %14, %15 : vector<36x16x128xi1>, vector<36x16x128xf32>
    %17 = vector.broadcast %13 : f32 to vector<36x16x128xf32>
    %18 = arith.subf %12, %17 : vector<36x16x128xf32>
    %cst_8 = arith.constant 0.000000e+00 : f32
    %19 = vector.broadcast %cst_8 : f32 to vector<36x16x128xf32>
    %20 = arith.select %10, %18, %19 : vector<36x16x128xi1>, vector<36x16x128xf32>
    %c0_9 = arith.constant 0 : index
    %c0_10 = arith.constant 0 : index
    %c0_11 = arith.constant 0 : index
    %21 = vector.load %arg5[%c0_9, %c0_10, %c0_11] : memref<1x16x128xf32, #tpu.memory_space<vmem>>, vector<1x16x128xf32>
    %22 = vector.shape_cast %21 : vector<1x16x128xf32> to vector<16x128xf32>
    %23 = arith.mulf %16, %16 : vector<36x16x128xf32>
    %cst_12 = arith.constant dense<0.000000e+00> : vector<16x128xf32>
    %24 = vector.multi_reduction <add>, %23, %cst_12 [0] : vector<36x16x128xf32> to vector<16x128xf32>
    %25 = arith.addf %22, %24 : vector<16x128xf32>
    %c0_13 = arith.constant 0 : index
    %c0_14 = arith.constant 0 : index
    %c0_15 = arith.constant 0 : index
    %26 = vector.load %arg5[%c0_13, %c0_14, %c0_15] : memref<1x16x128xf32, #tpu.memory_space<vmem>>, vector<1x16x128xf32>
    %27 = vector.shape_cast %26 : vector<1x16x128xf32> to vector<16x128xf32>
    %28 = vector.shape_cast %25 : vector<16x128xf32> to vector<1x16x128xf32>
    tpu.vector_store %arg5[%c0_13, %c0_14, %c0_15], %28 {strides = array<i32>} : memref<1x16x128xf32, #tpu.memory_space<vmem>>, vector<1x16x128xf32>,
    %c0_16 = arith.constant 0 : index
    %c0_17 = arith.constant 0 : index
    %c0_18 = arith.constant 0 : index
    %29 = vector.load %arg6[%c0_16, %c0_17, %c0_18] : memref<1x16x128xf32, #tpu.memory_space<vmem>>, vector<1x16x128xf32>
    %30 = vector.shape_cast %29 : vector<1x16x128xf32> to vector<16x128xf32>
    %cst_19 = arith.constant dense<0.000000e+00> : vector<16x128xf32>
    %31 = vector.multi_reduction <add>, %20, %cst_19 [0] : vector<36x16x128xf32> to vector<16x128xf32>
    %32 = arith.addf %30, %31 : vector<16x128xf32>
    %c0_20 = arith.constant 0 : index
    %c0_21 = arith.constant 0 : index
    %c0_22 = arith.constant 0 : index
    %33 = vector.load %arg6[%c0_20, %c0_21, %c0_22] : memref<1x16x128xf32, #tpu.memory_space<vmem>>, vector<1x16x128xf32>
    %34 = vector.shape_cast %33 : vector<1x16x128xf32> to vector<16x128xf32>
    %35 = vector.shape_cast %32 : vector<16x128xf32> to vector<1x16x128xf32>
    tpu.vector_store %arg6[%c0_20, %c0_21, %c0_22], %35 {strides = array<i32>} : memref<1x16x128xf32, #tpu.memory_space<vmem>>, vector<1x16x128xf32>,
    %c0_23 = arith.constant 0 : index
    %c0_24 = arith.constant 0 : index
    %c0_25 = arith.constant 0 : index
    %36 = vector.load %arg7[%c0_23, %c0_24, %c0_25] : memref<1x16x128xf32, #tpu.memory_space<vmem>>, vector<1x16x128xf32>
    %37 = vector.shape_cast %36 : vector<1x16x128xf32> to vector<16x128xf32>
    %38 = arith.mulf %20, %20 : vector<36x16x128xf32>
    %cst_26 = arith.constant dense<0.000000e+00> : vector<16x128xf32>
    %39 = vector.multi_reduction <add>, %38, %cst_26 [0] : vector<36x16x128xf32> to vector<16x128xf32>
    %40 = arith.addf %37, %39 : vector<16x128xf32>
    %c0_27 = arith.constant 0 : index
    %c0_28 = arith.constant 0 : index
    %c0_29 = arith.constant 0 : index
    %41 = vector.load %arg7[%c0_27, %c0_28, %c0_29] : memref<1x16x128xf32, #tpu.memory_space<vmem>>, vector<1x16x128xf32>
    %42 = vector.shape_cast %41 : vector<1x16x128xf32> to vector<16x128xf32>
    %43 = vector.shape_cast %40 : vector<16x128xf32> to vector<1x16x128xf32>
    tpu.vector_store %arg7[%c0_27, %c0_28, %c0_29], %43 {strides = array<i32>} : memref<1x16x128xf32, #tpu.memory_space<vmem>>, vector<1x16x128xf32>,
    return
  }
  func.func @transform_0(%arg0: i32, %arg1: i32) -> i32 {
    %c0_i32 = arith.constant 0 : i32
    %c0_i32_0 = arith.constant 0 : i32
    return %c0_i32 : i32
  }
  func.func @transform_1(%arg0: i32, %arg1: i32) -> (i32, i32, i32) {
    %c1_i32 = arith.constant 1 : i32
    %0 = arith.muli %arg0, %c1_i32 : i32
    %1 = arith.addi %0, %arg1 : i32
    %c0_i32 = arith.constant 0 : i32
    %2 = arith.minsi %1, %c0_i32 : i32
    %c0_i32_0 = arith.constant 0 : i32
    %c0_i32_1 = arith.constant 0 : i32
    %c0_i32_2 = arith.constant 0 : i32
    return %2, %c0_i32_0, %c0_i32_1 : i32, i32, i32
  }
  func.func @transform_2(%arg0: i32, %arg1: i32) -> (i32, i32, i32) {
    %c1_i32 = arith.constant 1 : i32
    %0 = arith.muli %arg0, %c1_i32 : i32
    %1 = arith.addi %0, %arg1 : i32
    %c0_i32 = arith.constant 0 : i32
    %2 = arith.minsi %1, %c0_i32 : i32
    %c0_i32_0 = arith.constant 0 : i32
    %c0_i32_1 = arith.constant 0 : i32
    %c0_i32_2 = arith.constant 0 : i32
    return %2, %c0_i32_0, %c0_i32_1 : i32, i32, i32
  }
  func.func @transform_3(%arg0: i32, %arg1: i32) -> (i32, i32, i32) {
    %c0_i32 = arith.constant 0 : i32
    %c0_i32_0 = arith.constant 0 : i32
    %c0_i32_1 = arith.constant 0 : i32
    return %arg0, %c0_i32, %c0_i32_0 : i32, i32, i32
  }
  func.func @transform_4(%arg0: i32, %arg1: i32) -> (i32, i32, i32) {
    %c0_i32 = arith.constant 0 : i32
    %c0_i32_0 = arith.constant 0 : i32
    %c0_i32_1 = arith.constant 0 : i32
    return %arg0, %c0_i32, %c0_i32_0 : i32, i32, i32
  }
  func.func @transform_5(%arg0: i32, %arg1: i32) -> (i32, i32, i32) {
    %c0_i32 = arith.constant 0 : i32
    %c0_i32_0 = arith.constant 0 : i32
    %c0_i32_1 = arith.constant 0 : i32
    return %arg0, %c0_i32, %c0_i32_0 : i32, i32, i32
  }
}

</mosaic_0001>

<llo_original>
// kernel: tpu_custom_call.1
$region0: #{tpu_custom_call.1}
  #allocation0 [shape = 'u32[]', space=smem, size = 0x4, offset = 0x4, fixed_abs, tag = 'smem constant byte address 0x4 - core index']
  #allocation1 [shape = 'u32[72,128]{1,0:T(1,128)}', space=vmem, size = 0x9000, scoped, tag = 'internal scratch']
  #allocation2 [shape = 'f32[1]{0:T(128)S(6)}', space=smem, size = 0x200, scoped, tag = 'scoped memory for tpu_custom_call.1']
  %s0 = inlined_call_operand.<no memory space> [shape: f32[1], index: 0, kind: input, shape index: {}]
  %s1 = inlined_call_operand.hbm [shape: f32[36,16,128], index: 1, kind: input, shape index: {}]
  %s2 = inlined_call_operand.hbm [shape: f32[36,16,128], index: 2, kind: input, shape index: {}]
  %s3 = inlined_call_operand.hbm [shape: f32[1,16,128], index: 3, kind: output, shape index: {0}]
  %s4 = inlined_call_operand.hbm [shape: f32[1,16,128], index: 4, kind: output, shape index: {1}]
  %s5 = inlined_call_operand.hbm [shape: f32[1,16,128], index: 5, kind: output, shape index: {2}]
  %6 = xla_tuple %s3, %s4, %s5
  %s7 = sld [smem:[#allocation0]]
  $region50: #{tpu_custom_call.1} parent=0
    _
  %s9 = ssub.s32 1, %s7
  %s10 = scalar_select 0, %s9, %s7
  %11 = sst [smem:[#allocation2]] %s0
  $region1: #{tpu_custom_call.1} parent=0
    #allocation3 [shape = 'u8[294912]{0}', space=vmem, size = 0x48000, scoped, tag = 'input window, operand 1, single buffered']
    #allocation4 [shape = 's32[1]{0}', space=sflag, size = 0x4, scoped, tag = 'scoped memory for tpu_custom_call.1']
    #allocation5 [shape = 's32[1]{0}', space=sflag, size = 0x4, scoped, tag = 'scoped memory for tpu_custom_call.1']
    #allocation6 [shape = 'u8[294912]{0}', space=vmem, size = 0x48000, scoped, tag = 'input window, operand 2, single buffered']
    #allocation7 [shape = 's32[1]{0}', space=sflag, size = 0x4, scoped, tag = 'scoped memory for tpu_custom_call.1']
    #allocation8 [shape = 'u8[8192]{0}', space=vmem, size = 0x2000, scoped, tag = 'output window, operand 0, single buffered']
    #allocation9 [shape = 'u8[8192]{0}', space=vmem, size = 0x2000, scoped, tag = 'output window, operand 1, single buffered']
    #allocation10 [shape = 's32[1]{0}', space=sflag, size = 0x4, scoped, tag = 'scoped memory for tpu_custom_call.1']
    #allocation11 [shape = 'u8[8192]{0}', space=vmem, size = 0x2000, scoped, tag = 'output window, operand 2, single buffered']
    %12 = vsyncpa [#allocation4], 0
    %13 = vsyncpa [#allocation7], 0
    %14 = vsyncpa [#allocation5], 0
    %15 = vsyncpa [#allocation10], 0
    // Predicated region
    $region2: #{tpu_custom_call.1} parent=1 // pred_check
      _
    $region3: #{tpu_custom_call.1} parent=1 // pred_check_branch
      %17 = sbr.rel (0) target = $region5
    $region4: #{tpu_custom_call.1} parent=1 // pred_region
      _
    $region5: #{tpu_custom_call.1} parent=1 // pred_fallthru
      _
    // Predicated region
    $region6: #{tpu_custom_call.1} parent=1 // pred_check
      _
    $region7: #{tpu_custom_call.1} parent=1 // pred_check_branch
      %19 = sbr.rel (0) target = $region9
    $region8: #{tpu_custom_call.1} parent=1 // pred_region
      %s20 = sadd.s32 0, 0
      %p21 = scmp.lt.s32.totalorder %s20, 0
      %s22 = scalar_select %p21, %s20, 0
      %s23 = smul.u32 36, %s22
      %25 = vsyncadd [#allocation4], 0
      %s26 = smul.addr %s23, 2
      %s27 = smul.addr %s26, 8
      %s28 = scalar_lea.hbm %s1, %s27
      %s29 = sshll.u32 %s28, 4
      %s30 = int_to_ptr.hbm [resolvable:$true] %s29
      %s31 = sshll.u32 [#allocation3], 4
      %s32 = int_to_ptr.vmem [resolvable:$true] %s31
      %37 = dma.hbm_to_vmem [thread:$0]  %s30, 9216, %s32, [#allocation4], 128, 128, 8
    $region9: #{tpu_custom_call.1} parent=1 // pred_fallthru
      _
    // Predicated region
    $region10: #{tpu_custom_call.1} parent=1 // pred_check
      _
    $region11: #{tpu_custom_call.1} parent=1 // pred_check_branch
      %39 = sbr.rel (0) target = $region13
    $region12: #{tpu_custom_call.1} parent=1 // pred_region
      %s40 = sadd.s32 0, 0
      %p41 = scmp.lt.s32.totalorder %s40, 0
      %s42 = scalar_select %p41, %s40, 0
      %s43 = smul.u32 36, %s42
      %45 = vsyncadd [#allocation7], 0
      %s46 = smul.addr %s43, 2
      %s47 = smul.addr %s46, 8
      %s48 = scalar_lea.hbm %s2, %s47
      %s49 = sshll.u32 %s48, 4
      %s50 = int_to_ptr.hbm [resolvable:$true] %s49
      %s51 = sshll.u32 [#allocation6], 4
      %s52 = int_to_ptr.vmem [resolvable:$true] %s51
      %57 = dma.hbm_to_vmem [thread:$0]  %s50, 9216, %s52, [#allocation7], 128, 128, 8
    $region13: #{tpu_custom_call.1} parent=1 // pred_fallthru
      _
    // Predicated region
    $region14: #{tpu_custom_call.1} parent=1 // pred_check
      _
    $region15: #{tpu_custom_call.1} parent=1 // pred_check_branch
      %59 = sbr.rel (0) target = $region17
    $region16: #{tpu_custom_call.1} parent=1 // pred_region
      %61 = dma.done [#allocation4], 9216
    $region17: #{tpu_custom_call.1} parent=1 // pred_fallthru
      _
    // Predicated region
    $region18: #{tpu_custom_call.1} parent=1 // pred_check
      _
    $region19: #{tpu_custom_call.1} parent=1 // pred_check_branch
      %63 = sbr.rel (0) target = $region21
    $region20: #{tpu_custom_call.1} parent=1 // pred_region
      %65 = dma.done [#allocation7], 9216
    $region21: #{tpu_custom_call.1} parent=1 // pred_fallthru
      _
    %s66 = sadd.s32 0, 0
    %p67 = scmp.lt.s32.totalorder %s66, 0
    %s68 = scalar_select %p67, %s66, 0
    %s69 = smul.u32 36, %s68
    %s70 = sadd.s32 0, 0
    %p71 = scmp.lt.s32.totalorder %s70, 0
    %s72 = scalar_select %p71, %s70, 0
    %s73 = smul.u32 36, %s72
    %p74 = scmp.eq.s32.totalorder 0, 0
    // Predicated region
    $region22: #{tpu_custom_call.1} parent=1 // pred_check
      %p75 = pneg %p74
    $region23: #{tpu_custom_call.1} parent=1 // pred_check_branch
      %77 = sbr.rel (%p75) target = $region25
    $region24: #{tpu_custom_call.1} parent=1 // pred_region
      %78 = vst [vmem:[#allocation8] sm:$0xff] 0.0
      %79 = vst [vmem:[#allocation8 + $0x8] sm:$0xff] 0.0
      %80 = vst [vmem:[#allocation9] sm:$0xff] 0.0
      %81 = vst [vmem:[#allocation9 + $0x8] sm:$0xff] 0.0
      %82 = vst [vmem:[#allocation11] sm:$0xff] 0.0
      %83 = vst [vmem:[#allocation11 + $0x8] sm:$0xff] 0.0
    $region25: #{tpu_custom_call.1} parent=1 // pred_fallthru
      _
    %s84 = sadd.s32 0, 0
    %s85 = smul.u32 %s84, 36
    %v86 = vstv %s85
    %v87 = vadd.s32 %v86, 1
    %v88 = vadd.s32 %v86, 2
    %v89 = vadd.s32 %v86, 3
    %v90 = vadd.s32 %v86, 4
    %v91 = vadd.s32 %v86, 5
    %v92 = vadd.s32 %v86, 6
    %v93 = vadd.s32 %v86, 7
    %v94 = vadd.s32 %v86, 8
    %v95 = vadd.s32 %v86, 9
    %v96 = vadd.s32 %v86, 10
    %v97 = vadd.s32 %v86, 11
    %v98 = vadd.s32 %v86, 12
    %v99 = vadd.s32 %v86, 13
    %v100 = vadd.s32 %v86, 14
    %v101 = vadd.s32 %v86, 15
    %v102 = vadd.s32 %v86, 16
    %v103 = vadd.s32 %v86, 17
    %v104 = vadd.s32 %v86, 18
    %v105 = vadd.s32 %v86, 19
    %v106 = vadd.s32 %v86, 20
    %v107 = vadd.s32 %v86, 21
    %v108 = vadd.s32 %v86, 22
    %v109 = vadd.s32 %v86, 23
    %v110 = vadd.s32 %v86, 24
    %v111 = vadd.s32 %v86, 25
    %v112 = vadd.s32 %v86, 26
    %v113 = vadd.s32 %v86, 27
    %v114 = vadd.s32 %v86, 28
    %v115 = vadd.s32 %v86, 29
    %v116 = vadd.s32 %v86, 30
    %v117 = vadd.s32 %v86, 31
    %v118 = vadd.s32 %v86, 32
    %v119 = vadd.s32 %v86, 33
    %v120 = vadd.s32 %v86, 34
    %v121 = vadd.s32 %v86, 35
    %vm122 = vcmp.lt.s32.totalorder %v86, 36
    %vm123 = vcmp.lt.s32.totalorder %v87, 36
    %vm124 = vcmp.lt.s32.totalorder %v88, 36
    %vm125 = vcmp.lt.s32.totalorder %v89, 36
    %vm126 = vcmp.lt.s32.totalorder %v90, 36
    %vm127 = vcmp.lt.s32.totalorder %v91, 36
    %vm128 = vcmp.lt.s32.totalorder %v92, 36
    %vm129 = vcmp.lt.s32.totalorder %v93, 36
    %vm130 = vcmp.lt.s32.totalorder %v94, 36
    %vm131 = vcmp.lt.s32.totalorder %v95, 36
    %vm132 = vcmp.lt.s32.totalorder %v96, 36
    %vm133 = vcmp.lt.s32.totalorder %v97, 36
    %vm134 = vcmp.lt.s32.totalorder %v98, 36
    %vm135 = vcmp.lt.s32.totalorder %v99, 36
    %vm136 = vcmp.lt.s32.totalorder %v100, 36
    %vm137 = vcmp.lt.s32.totalorder %v101, 36
    %vm138 = vcmp.lt.s32.totalorder %v102, 36
    %vm139 = vcmp.lt.s32.totalorder %v103, 36
    %vm140 = vcmp.lt.s32.totalorder %v104, 36
    %vm141 = vcmp.lt.s32.totalorder %v105, 36
    %vm142 = vcmp.lt.s32.totalorder %v106, 36
    %vm143 = vcmp.lt.s32.totalorder %v107, 36
    %vm144 = vcmp.lt.s32.totalorder %v108, 36
    %vm145 = vcmp.lt.s32.totalorder %v109, 36
    %vm146 = vcmp.lt.s32.totalorder %v110, 36
    %vm147 = vcmp.lt.s32.totalorder %v111, 36
    %vm148 = vcmp.lt.s32.totalorder %v112, 36
    %vm149 = vcmp.lt.s32.totalorder %v113, 36
    %vm150 = vcmp.lt.s32.totalorder %v114, 36
    %vm151 = vcmp.lt.s32.totalorder %v115, 36
    %vm152 = vcmp.lt.s32.totalorder %v116, 36
    %vm153 = vcmp.lt.s32.totalorder %v117, 36
    %vm154 = vcmp.lt.s32.totalorder %v118, 36
    %vm155 = vcmp.lt.s32.totalorder %v119, 36
    %vm156 = vcmp.lt.s32.totalorder %v120, 36
    %vm157 = vcmp.lt.s32.totalorder %v121, 36
    %v158 = vld [vmem:[#allocation3] sm:$0xff]
    %v159 = vld [vmem:[#allocation3 + $0x8] sm:$0xff]
    %v160 = vld [vmem:[#allocation3 + $0x10] sm:$0xff]
    %v161 = vld [vmem:[#allocation3 + $0x18] sm:$0xff]
    %v162 = vld [vmem:[#allocation3 + $0x20] sm:$0xff]
    %v163 = vld [vmem:[#allocation3 + $0x28] sm:$0xff]
    %v164 = vld [vmem:[#allocation3 + $0x30] sm:$0xff]
    %v165 = vld [vmem:[#allocation3 + $0x38] sm:$0xff]
    %v166 = vld [vmem:[#allocation3 + $0x40] sm:$0xff]
    %v167 = vld [vmem:[#allocation3 + $0x48] sm:$0xff]
    %v168 = vld [vmem:[#allocation3 + $0x50] sm:$0xff]
    %v169 = vld [vmem:[#allocation3 + $0x58] sm:$0xff]
    %v170 = vld [vmem:[#allocation3 + $0x60] sm:$0xff]
    %v171 = vld [vmem:[#allocation3 + $0x68] sm:$0xff]
    %v172 = vld [vmem:[#allocation3 + $0x70] sm:$0xff]
    %v173 = vld [vmem:[#allocation3 + $0x78] sm:$0xff]
    %v174 = vld [vmem:[#allocation3 + $0x80] sm:$0xff]
    %v175 = vld [vmem:[#allocation3 + $0x88] sm:$0xff]
    %v176 = vld [vmem:[#allocation3 + $0x90] sm:$0xff]
    %v177 = vld [vmem:[#allocation3 + $0x98] sm:$0xff]
    %v178 = vld [vmem:[#allocation3 + $0xa0] sm:$0xff]
    %v179 = vld [vmem:[#allocation3 + $0xa8] sm:$0xff]
    %v180 = vld [vmem:[#allocation3 + $0xb0] sm:$0xff]
    %v181 = vld [vmem:[#allocation3 + $0xb8] sm:$0xff]
    %v182 = vld [vmem:[#allocation3 + $0xc0] sm:$0xff]
    %v183 = vld [vmem:[#allocation3 + $0xc8] sm:$0xff]
    %v184 = vld [vmem:[#allocation3 + $0xd0] sm:$0xff]
    %v185 = vld [vmem:[#allocation3 + $0xd8] sm:$0xff]
    %v186 = vld [vmem:[#allocation3 + $0xe0] sm:$0xff]
    %v187 = vld [vmem:[#allocation3 + $0xe8] sm:$0xff]
    %v188 = vld [vmem:[#allocation3 + $0xf0] sm:$0xff]
    %v189 = vld [vmem:[#allocation3 + $0xf8] sm:$0xff]
    %v190 = vld [vmem:[#allocation3 + $0x100] sm:$0xff]
    %v191 = vld [vmem:[#allocation3 + $0x108] sm:$0xff]
    %v192 = vld [vmem:[#allocation3 + $0x110] sm:$0xff]
    %v193 = vld [vmem:[#allocation3 + $0x118] sm:$0xff]
    %v194 = vld [vmem:[#allocation3 + $0x120] sm:$0xff]
    %v195 = vld [vmem:[#allocation3 + $0x128] sm:$0xff]
    %v196 = vld [vmem:[#allocation3 + $0x130] sm:$0xff]
    %v197 = vld [vmem:[#allocation3 + $0x138] sm:$0xff]
    %v198 = vld [vmem:[#allocation3 + $0x140] sm:$0xff]
    %v199 = vld [vmem:[#allocation3 + $0x148] sm:$0xff]
    %v200 = vld [vmem:[#allocation3 + $0x150] sm:$0xff]
    %v201 = vld [vmem:[#allocation3 + $0x158] sm:$0xff]
    %v202 = vld [vmem:[#allocation3 + $0x160] sm:$0xff]
    %v203 = vld [vmem:[#allocation3 + $0x168] sm:$0xff]
    %v204 = vld [vmem:[#allocation3 + $0x170] sm:$0xff]
    %v205 = vld [vmem:[#allocation3 + $0x178] sm:$0xff]
    %v206 = vld [vmem:[#allocation3 + $0x180] sm:$0xff]
    %v207 = vld [vmem:[#allocation3 + $0x188] sm:$0xff]
    %v208 = vld [vmem:[#allocation3 + $0x190] sm:$0xff]
    %v209 = vld [vmem:[#allocation3 + $0x198] sm:$0xff]
    %v210 = vld [vmem:[#allocation3 + $0x1a0] sm:$0xff]
    %v211 = vld [vmem:[#allocation3 + $0x1a8] sm:$0xff]
    %v212 = vld [vmem:[#allocation3 + $0x1b0] sm:$0xff]
    %v213 = vld [vmem:[#allocation3 + $0x1b8] sm:$0xff]
    %v214 = vld [vmem:[#allocation3 + $0x1c0] sm:$0xff]
    %v215 = vld [vmem:[#allocation3 + $0x1c8] sm:$0xff]
    %v216 = vld [vmem:[#allocation3 + $0x1d0] sm:$0xff]
    %v217 = vld [vmem:[#allocation3 + $0x1d8] sm:$0xff]
    %v218 = vld [vmem:[#allocation3 + $0x1e0] sm:$0xff]
    %v219 = vld [vmem:[#allocation3 + $0x1e8] sm:$0xff]
    %v220 = vld [vmem:[#allocation3 + $0x1f0] sm:$0xff]
    %v221 = vld [vmem:[#allocation3 + $0x1f8] sm:$0xff]
    %v222 = vld [vmem:[#allocation3 + $0x200] sm:$0xff]
    %v223 = vld [vmem:[#allocation3 + $0x208] sm:$0xff]
    %v224 = vld [vmem:[#allocation3 + $0x210] sm:$0xff]
    %v225 = vld [vmem:[#allocation3 + $0x218] sm:$0xff]
    %v226 = vld [vmem:[#allocation3 + $0x220] sm:$0xff]
    %v227 = vld [vmem:[#allocation3 + $0x228] sm:$0xff]
    %v228 = vld [vmem:[#allocation3 + $0x230] sm:$0xff]
    %v229 = vld [vmem:[#allocation3 + $0x238] sm:$0xff]
    %v230 = vld [vmem:[#allocation6] sm:$0xff]
    %v231 = vld [vmem:[#allocation6 + $0x8] sm:$0xff]
    %v232 = vld [vmem:[#allocation6 + $0x10] sm:$0xff]
    %v233 = vld [vmem:[#allocation6 + $0x18] sm:$0xff]
    %v234 = vld [vmem:[#allocation6 + $0x20] sm:$0xff]
    %v235 = vld [vmem:[#allocation6 + $0x28] sm:$0xff]
    %v236 = vld [vmem:[#allocation6 + $0x30] sm:$0xff]
    %v237 = vld [vmem:[#allocation6 + $0x38] sm:$0xff]
    %v238 = vld [vmem:[#allocation6 + $0x40] sm:$0xff]
    %v239 = vld [vmem:[#allocation6 + $0x48] sm:$0xff]
    %v240 = vld [vmem:[#allocation6 + $0x50] sm:$0xff]
    %v241 = vld [vmem:[#allocation6 + $0x58] sm:$0xff]
    %v242 = vld [vmem:[#allocation6 + $0x60] sm:$0xff]
    %v243 = vld [vmem:[#allocation6 + $0x68] sm:$0xff]
    %v244 = vld [vmem:[#allocation6 + $0x70] sm:$0xff]
    %v245 = vld [vmem:[#allocation6 + $0x78] sm:$0xff]
    %v246 = vld [vmem:[#allocation6 + $0x80] sm:$0xff]
    %v247 = vld [vmem:[#allocation6 + $0x88] sm:$0xff]
    %v248 = vld [vmem:[#allocation6 + $0x90] sm:$0xff]
    %v249 = vld [vmem:[#allocation6 + $0x98] sm:$0xff]
    %v250 = vld [vmem:[#allocation6 + $0xa0] sm:$0xff]
    %v251 = vld [vmem:[#allocation6 + $0xa8] sm:$0xff]
    %v252 = vld [vmem:[#allocation6 + $0xb0] sm:$0xff]
    %v253 = vld [vmem:[#allocation6 + $0xb8] sm:$0xff]
    %v254 = vld [vmem:[#allocation6 + $0xc0] sm:$0xff]
    %v255 = vld [vmem:[#allocation6 + $0xc8] sm:$0xff]
    %v256 = vld [vmem:[#allocation6 + $0xd0] sm:$0xff]
    %v257 = vld [vmem:[#allocation6 + $0xd8] sm:$0xff]
    %v258 = vld [vmem:[#allocation6 + $0xe0] sm:$0xff]
    %v259 = vld [vmem:[#allocation6 + $0xe8] sm:$0xff]
    %v260 = vld [vmem:[#allocation6 + $0xf0] sm:$0xff]
    %v261 = vld [vmem:[#allocation6 + $0xf8] sm:$0xff]
    %v262 = vld [vmem:[#allocation6 + $0x100] sm:$0xff]
    %v263 = vld [vmem:[#allocation6 + $0x108] sm:$0xff]
    %v264 = vld [vmem:[#allocation6 + $0x110] sm:$0xff]
    %v265 = vld [vmem:[#allocation6 + $0x118] sm:$0xff]
    %v266 = vld [vmem:[#allocation6 + $0x120] sm:$0xff]
    %v267 = vld [vmem:[#allocation6 + $0x128] sm:$0xff]
    %v268 = vld [vmem:[#allocation6 + $0x130] sm:$0xff]
    %v269 = vld [vmem:[#allocation6 + $0x138] sm:$0xff]
    %v270 = vld [vmem:[#allocation6 + $0x140] sm:$0xff]
    %v271 = vld [vmem:[#allocation6 + $0x148] sm:$0xff]
    %v272 = vld [vmem:[#allocation6 + $0x150] sm:$0xff]
    %v273 = vld [vmem:[#allocation6 + $0x158] sm:$0xff]
    %v274 = vld [vmem:[#allocation6 + $0x160] sm:$0xff]
    %v275 = vld [vmem:[#allocation6 + $0x168] sm:$0xff]
    %v276 = vld [vmem:[#allocation6 + $0x170] sm:$0xff]
    %v277 = vld [vmem:[#allocation6 + $0x178] sm:$0xff]
    %v278 = vld [vmem:[#allocation6 + $0x180] sm:$0xff]
    %v279 = vld [vmem:[#allocation6 + $0x188] sm:$0xff]
    %v280 = vld [vmem:[#allocation6 + $0x190] sm:$0xff]
    %v281 = vld [vmem:[#allocation6 + $0x198] sm:$0xff]
    %v282 = vld [vmem:[#allocation6 + $0x1a0] sm:$0xff]
    %v283 = vld [vmem:[#allocation6 + $0x1a8] sm:$0xff]
    %v284 = vld [vmem:[#allocation6 + $0x1b0] sm:$0xff]
    %v285 = vld [vmem:[#allocation6 + $0x1b8] sm:$0xff]
    %v286 = vld [vmem:[#allocation6 + $0x1c0] sm:$0xff]
    %v287 = vld [vmem:[#allocation6 + $0x1c8] sm:$0xff]
    %v288 = vld [vmem:[#allocation6 + $0x1d0] sm:$0xff]
    %v289 = vld [vmem:[#allocation6 + $0x1d8] sm:$0xff]
    %v290 = vld [vmem:[#allocation6 + $0x1e0] sm:$0xff]
    %v291 = vld [vmem:[#allocation6 + $0x1e8] sm:$0xff]
    %v292 = vld [vmem:[#allocation6 + $0x1f0] sm:$0xff]
    %v293 = vld [vmem:[#allocation6 + $0x1f8] sm:$0xff]
    %v294 = vld [vmem:[#allocation6 + $0x200] sm:$0xff]
    %v295 = vld [vmem:[#allocation6 + $0x208] sm:$0xff]
    %v296 = vld [vmem:[#allocation6 + $0x210] sm:$0xff]
    %v297 = vld [vmem:[#allocation6 + $0x218] sm:$0xff]
    %v298 = vld [vmem:[#allocation6 + $0x220] sm:$0xff]
    %v299 = vld [vmem:[#allocation6 + $0x228] sm:$0xff]
    %v300 = vld [vmem:[#allocation6 + $0x230] sm:$0xff]
    %v301 = vld [vmem:[#allocation6 + $0x238] sm:$0xff]
    %s302 = sld [smem:[#allocation2]]
    %v303 = vsub.f32 %v158, %v230
    %v304 = vsub.f32 %v159, %v231
    %v305 = vsub.f32 %v160, %v232
    %v306 = vsub.f32 %v161, %v233
    %v307 = vsub.f32 %v162, %v234
    %v308 = vsub.f32 %v163, %v235
    %v309 = vsub.f32 %v164, %v236
    %v310 = vsub.f32 %v165, %v237
    %v311 = vsub.f32 %v166, %v238
    %v312 = vsub.f32 %v167, %v239
    %v313 = vsub.f32 %v168, %v240
    %v314 = vsub.f32 %v169, %v241
    %v315 = vsub.f32 %v170, %v242
    %v316 = vsub.f32 %v171, %v243
    %v317 = vsub.f32 %v172, %v244
    %v318 = vsub.f32 %v173, %v245
    %v319 = vsub.f32 %v174, %v246
    %v320 = vsub.f32 %v175, %v247
    %v321 = vsub.f32 %v176, %v248
    %v322 = vsub.f32 %v177, %v249
    %v323 = vsub.f32 %v178, %v250
    %v324 = vsub.f32 %v179, %v251
    %v325 = vsub.f32 %v180, %v252
    %v326 = vsub.f32 %v181, %v253
    %v327 = vsub.f32 %v182, %v254
    %v328 = vsub.f32 %v183, %v255
    %v329 = vsub.f32 %v184, %v256
    %v330 = vsub.f32 %v185, %v257
    %v331 = vsub.f32 %v186, %v258
    %v332 = vsub.f32 %v187, %v259
    %v333 = vsub.f32 %v188, %v260
    %v334 = vsub.f32 %v189, %v261
    %v335 = vsub.f32 %v190, %v262
    %v336 = vsub.f32 %v191, %v263
    %v337 = vsub.f32 %v192, %v264
    %v338 = vsub.f32 %v193, %v265
    %v339 = vsub.f32 %v194, %v266
    %v340 = vsub.f32 %v195, %v267
    %v341 = vsub.f32 %v196, %v268
    %v342 = vsub.f32 %v197, %v269
    %v343 = vsub.f32 %v198, %v270
    %v344 = vsub.f32 %v199, %v271
    %v345 = vsub.f32 %v200, %v272
    %v346 = vsub.f32 %v201, %v273
    %v347 = vsub.f32 %v202, %v274
    %v348 = vsub.f32 %v203, %v275
    %v349 = vsub.f32 %v204, %v276
    %v350 = vsub.f32 %v205, %v277
    %v351 = vsub.f32 %v206, %v278
    %v352 = vsub.f32 %v207, %v279
    %v353 = vsub.f32 %v208, %v280
    %v354 = vsub.f32 %v209, %v281
    %v355 = vsub.f32 %v210, %v282
    %v356 = vsub.f32 %v211, %v283
    %v357 = vsub.f32 %v212, %v284
    %v358 = vsub.f32 %v213, %v285
    %v359 = vsub.f32 %v214, %v286
    %v360 = vsub.f32 %v215, %v287
    %v361 = vsub.f32 %v216, %v288
    %v362 = vsub.f32 %v217, %v289
    %v363 = vsub.f32 %v218, %v290
    %v364 = vsub.f32 %v219, %v291
    %v365 = vsub.f32 %v220, %v292
    %v366 = vsub.f32 %v221, %v293
    %v367 = vsub.f32 %v222, %v294
    %v368 = vsub.f32 %v223, %v295
    %v369 = vsub.f32 %v224, %v296
    %v370 = vsub.f32 %v225, %v297
    %v371 = vsub.f32 %v226, %v298
    %v372 = vsub.f32 %v227, %v299
    %v373 = vsub.f32 %v228, %v300
    %v374 = vsub.f32 %v229, %v301
    %v375 = vsel %vm122, %v303, 0.0
    %v376 = vsel %vm122, %v304, 0.0
    %v377 = vsel %vm123, %v305, 0.0
    %v378 = vsel %vm123, %v306, 0.0
    %v379 = vsel %vm124, %v307, 0.0
    %v380 = vsel %vm124, %v308, 0.0
    %v381 = vsel %vm125, %v309, 0.0
    %v382 = vsel %vm125, %v310, 0.0
    %v383 = vsel %vm126, %v311, 0.0
    %v384 = vsel %vm126, %v312, 0.0
    %v385 = vsel %vm127, %v313, 0.0
    %v386 = vsel %vm127, %v314, 0.0
    %v387 = vsel %vm128, %v315, 0.0
    %v388 = vsel %vm128, %v316, 0.0
    %v389 = vsel %vm129, %v317, 0.0
    %v390 = vsel %vm129, %v318, 0.0
    %v391 = vsel %vm130, %v319, 0.0
    %v392 = vsel %vm130, %v320, 0.0
    %v393 = vsel %vm131, %v321, 0.0
    %v394 = vsel %vm131, %v322, 0.0
    %v395 = vsel %vm132, %v323, 0.0
    %v396 = vsel %vm132, %v324, 0.0
    %v397 = vsel %vm133, %v325, 0.0
    %v398 = vsel %vm133, %v326, 0.0
    %v399 = vsel %vm134, %v327, 0.0
    %v400 = vsel %vm134, %v328, 0.0
    %v401 = vsel %vm135, %v329, 0.0
    %v402 = vsel %vm135, %v330, 0.0
    %v403 = vsel %vm136, %v331, 0.0
    %v404 = vsel %vm136, %v332, 0.0
    %v405 = vsel %vm137, %v333, 0.0
    %v406 = vsel %vm137, %v334, 0.0
    %v407 = vsel %vm138, %v335, 0.0
    %v408 = vsel %vm138, %v336, 0.0
    %v409 = vsel %vm139, %v337, 0.0
    %v410 = vsel %vm139, %v338, 0.0
    %v411 = vsel %vm140, %v339, 0.0
    %v412 = vsel %vm140, %v340, 0.0
    %v413 = vsel %vm141, %v341, 0.0
    %v414 = vsel %vm141, %v342, 0.0
    %v415 = vsel %vm142, %v343, 0.0
    %v416 = vsel %vm142, %v344, 0.0
    %v417 = vsel %vm143, %v345, 0.0
    %v418 = vsel %vm143, %v346, 0.0
    %v419 = vsel %vm144, %v347, 0.0
    %v420 = vsel %vm144, %v348, 0.0
    %v421 = vsel %vm145, %v349, 0.0
    %v422 = vsel %vm145, %v350, 0.0
    %v423 = vsel %vm146, %v351, 0.0
    %v424 = vsel %vm146, %v352, 0.0
    %v425 = vsel %vm147, %v353, 0.0
    %v426 = vsel %vm147, %v354, 0.0
    %v427 = vsel %vm148, %v355, 0.0
    %v428 = vsel %vm148, %v356, 0.0
    %v429 = vsel %vm149, %v357, 0.0
    %v430 = vsel %vm149, %v358, 0.0
    %v431 = vsel %vm150, %v359, 0.0
    %v432 = vsel %vm150, %v360, 0.0
    %v433 = vsel %vm151, %v361, 0.0
    %v434 = vsel %vm151, %v362, 0.0
    %v435 = vsel %vm152, %v363, 0.0
    %v436 = vsel %vm152, %v364, 0.0
    %v437 = vsel %vm153, %v365, 0.0
    %v438 = vsel %vm153, %v366, 0.0
    %v439 = vsel %vm154, %v367, 0.0
    %v440 = vsel %vm154, %v368, 0.0
    %v441 = vsel %vm155, %v369, 0.0
    %v442 = vsel %vm155, %v370, 0.0
    %v443 = vsel %vm156, %v371, 0.0
    %v444 = vsel %vm156, %v372, 0.0
    %v445 = vsel %vm157, %v373, 0.0
    %v446 = vsel %vm157, %v374, 0.0
    %v447 = vstv %s302
    %v448 = vsub.f32 %v230, %v447
    %v449 = vsub.f32 %v231, %v447
    %v450 = vsub.f32 %v232, %v447
    %v451 = vsub.f32 %v233, %v447
    %v452 = vsub.f32 %v234, %v447
    %v453 = vsub.f32 %v235, %v447
    %v454 = vsub.f32 %v236, %v447
    %v455 = vsub.f32 %v237, %v447
    %v456 = vsub.f32 %v238, %v447
    %v457 = vsub.f32 %v239, %v447
    %v458 = vsub.f32 %v240, %v447
    %v459 = vsub.f32 %v241, %v447
    %v460 = vsub.f32 %v242, %v447
    %v461 = vsub.f32 %v243, %v447
    %v462 = vsub.f32 %v244, %v447
    %v463 = vsub.f32 %v245, %v447
    %v464 = vsub.f32 %v246, %v447
    %v465 = vsub.f32 %v247, %v447
    %v466 = vsub.f32 %v248, %v447
    %v467 = vsub.f32 %v249, %v447
    %v468 = vsub.f32 %v250, %v447
    %v469 = vsub.f32 %v251, %v447
    %v470 = vsub.f32 %v252, %v447
    %v471 = vsub.f32 %v253, %v447
    %v472 = vsub.f32 %v254, %v447
    %v473 = vsub.f32 %v255, %v447
    %v474 = vsub.f32 %v256, %v447
    %v475 = vsub.f32 %v257, %v447
    %v476 = vsub.f32 %v258, %v447
    %v477 = vsub.f32 %v259, %v447
    %v478 = vsub.f32 %v260, %v447
    %v479 = vsub.f32 %v261, %v447
    %v480 = vsub.f32 %v262, %v447
    %v481 = vsub.f32 %v263, %v447
    %v482 = vsub.f32 %v264, %v447
    %v483 = vsub.f32 %v265, %v447
    %v484 = vsub.f32 %v266, %v447
    %v485 = vsub.f32 %v267, %v447
    %v486 = vsub.f32 %v268, %v447
    %v487 = vsub.f32 %v269, %v447
    %v488 = vsub.f32 %v270, %v447
    %v489 = vsub.f32 %v271, %v447
    %v490 = vsub.f32 %v272, %v447
    %v491 = vsub.f32 %v273, %v447
    %v492 = vsub.f32 %v274, %v447
    %v493 = vsub.f32 %v275, %v447
    %v494 = vsub.f32 %v276, %v447
    %v495 = vsub.f32 %v277, %v447
    %v496 = vsub.f32 %v278, %v447
    %v497 = vsub.f32 %v279, %v447
    %v498 = vsub.f32 %v280, %v447
    %v499 = vsub.f32 %v281, %v447
    %v500 = vsub.f32 %v282, %v447
    %v501 = vsub.f32 %v283, %v447
    %v502 = vsub.f32 %v284, %v447
    %v503 = vsub.f32 %v285, %v447
    %v504 = vsub.f32 %v286, %v447
    %v505 = vsub.f32 %v287, %v447
    %v506 = vsub.f32 %v288, %v447
    %v507 = vsub.f32 %v289, %v447
    %v508 = vsub.f32 %v290, %v447
    %v509 = vsub.f32 %v291, %v447
    %v510 = vsub.f32 %v292, %v447
    %v511 = vsub.f32 %v293, %v447
    %v512 = vsub.f32 %v294, %v447
    %v513 = vsub.f32 %v295, %v447
    %v514 = vsub.f32 %v296, %v447
    %v515 = vsub.f32 %v297, %v447
    %v516 = vsub.f32 %v298, %v447
    %v517 = vsub.f32 %v299, %v447
    %v518 = vsub.f32 %v300, %v447
    %v519 = vsub.f32 %v301, %v447
    %v520 = vsel %vm122, %v448, 0.0
    %v521 = vsel %vm122, %v449, 0.0
    %v522 = vsel %vm123, %v450, 0.0
    %v523 = vsel %vm123, %v451, 0.0
    %v524 = vsel %vm124, %v452, 0.0
    %v525 = vsel %vm124, %v453, 0.0
    %v526 = vsel %vm125, %v454, 0.0
    %v527 = vsel %vm125, %v455, 0.0
    %v528 = vsel %vm126, %v456, 0.0
    %v529 = vsel %vm126, %v457, 0.0
    %v530 = vsel %vm127, %v458, 0.0
    %v531 = vsel %vm127, %v459, 0.0
    %v532 = vsel %vm128, %v460, 0.0
    %v533 = vsel %vm128, %v461, 0.0
    %v534 = vsel %vm129, %v462, 0.0
    %v535 = vsel %vm129, %v463, 0.0
    %v536 = vsel %vm130, %v464, 0.0
    %v537 = vsel %vm130, %v465, 0.0
    %v538 = vsel %vm131, %v466, 0.0
    %v539 = vsel %vm131, %v467, 0.0
    %v540 = vsel %vm132, %v468, 0.0
    %v541 = vsel %vm132, %v469, 0.0
    %v542 = vsel %vm133, %v470, 0.0
    %v543 = vsel %vm133, %v471, 0.0
    %v544 = vsel %vm134, %v472, 0.0
    %v545 = vsel %vm134, %v473, 0.0
    %v546 = vsel %vm135, %v474, 0.0
    %v547 = vsel %vm135, %v475, 0.0
    %v548 = vsel %vm136, %v476, 0.0
    %v549 = vsel %vm136, %v477, 0.0
    %v550 = vsel %vm137, %v478, 0.0
    %v551 = vsel %vm137, %v479, 0.0
    %v552 = vsel %vm138, %v480, 0.0
    %v553 = vsel %vm138, %v481, 0.0
    %v554 = vsel %vm139, %v482, 0.0
    %v555 = vsel %vm139, %v483, 0.0
    %v556 = vsel %vm140, %v484, 0.0
    %v557 = vsel %vm140, %v485, 0.0
    %v558 = vsel %vm141, %v486, 0.0
    %v559 = vsel %vm141, %v487, 0.0
    %v560 = vsel %vm142, %v488, 0.0
    %v561 = vsel %vm142, %v489, 0.0
    %v562 = vsel %vm143, %v490, 0.0
    %v563 = vsel %vm143, %v491, 0.0
    %v564 = vsel %vm144, %v492, 0.0
    %v565 = vsel %vm144, %v493, 0.0
    %v566 = vsel %vm145, %v494, 0.0
    %v567 = vsel %vm145, %v495, 0.0
    %v568 = vsel %vm146, %v496, 0.0
    %v569 = vsel %vm146, %v497, 0.0
    %v570 = vsel %vm147, %v498, 0.0
    %v571 = vsel %vm147, %v499, 0.0
    %v572 = vsel %vm148, %v500, 0.0
    %v573 = vsel %vm148, %v501, 0.0
    %v574 = vsel %vm149, %v502, 0.0
    %v575 = vsel %vm149, %v503, 0.0
    %v576 = vsel %vm150, %v504, 0.0
    %v577 = vsel %vm150, %v505, 0.0
    %v578 = vsel %vm151, %v506, 0.0
    %v579 = vsel %vm151, %v507, 0.0
    %v580 = vsel %vm152, %v508, 0.0
    %v581 = vsel %vm152, %v509, 0.0
    %v582 = vsel %vm153, %v510, 0.0
    %v583 = vsel %vm153, %v511, 0.0
    %v584 = vsel %vm154, %v512, 0.0
    %v585 = vsel %vm154, %v513, 0.0
    %v586 = vsel %vm155, %v514, 0.0
    %v587 = vsel %vm155, %v515, 0.0
    %v588 = vsel %vm156, %v516, 0.0
    %v589 = vsel %vm156, %v517, 0.0
    %v590 = vsel %vm157, %v518, 0.0
    %v591 = vsel %vm157, %v519, 0.0
    %v592 = vld [vmem:[#allocation8] sm:$0xff]
    %v593 = vld [vmem:[#allocation8 + $0x8] sm:$0xff]
    %v594 = vmul.f32 %v375, %v375
    %v595 = vmul.f32 %v376, %v376
    %v596 = vmul.f32 %v377, %v377
    %v597 = vmul.f32 %v378, %v378
    %v598 = vmul.f32 %v379, %v379
    %v599 = vmul.f32 %v380, %v380
    %v600 = vmul.f32 %v381, %v381
    %v601 = vmul.f32 %v382, %v382
    %v602 = vmul.f32 %v383, %v383
    %v603 = vmul.f32 %v384, %v384
    %v604 = vmul.f32 %v385, %v385
    %v605 = vmul.f32 %v386, %v386
    %v606 = vmul.f32 %v387, %v387
    %v607 = vmul.f32 %v388, %v388
    %v608 = vmul.f32 %v389, %v389
    %v609 = vmul.f32 %v390, %v390
    %v610 = vmul.f32 %v391, %v391
    %v611 = vmul.f32 %v392, %v392
    %v612 = vmul.f32 %v393, %v393
    %v613 = vmul.f32 %v394, %v394
    %v614 = vmul.f32 %v395, %v395
    %v615 = vmul.f32 %v396, %v396
    %v616 = vmul.f32 %v397, %v397
    %v617 = vmul.f32 %v398, %v398
    %v618 = vmul.f32 %v399, %v399
    %v619 = vmul.f32 %v400, %v400
    %v620 = vmul.f32 %v401, %v401
    %v621 = vmul.f32 %v402, %v402
    %v622 = vmul.f32 %v403, %v403
    %v623 = vmul.f32 %v404, %v404
    %v624 = vmul.f32 %v405, %v405
    %v625 = vmul.f32 %v406, %v406
    %v626 = vmul.f32 %v407, %v407
    %v627 = vmul.f32 %v408, %v408
    %v628 = vmul.f32 %v409, %v409
    %v629 = vmul.f32 %v410, %v410
    %v630 = vmul.f32 %v411, %v411
    %v631 = vmul.f32 %v412, %v412
    %v632 = vmul.f32 %v413, %v413
    %v633 = vmul.f32 %v414, %v414
    %v634 = vmul.f32 %v415, %v415
    %v635 = vmul.f32 %v416, %v416
    %v636 = vmul.f32 %v417, %v417
    %v637 = vmul.f32 %v418, %v418
    %v638 = vmul.f32 %v419, %v419
    %v639 = vmul.f32 %v420, %v420
    %v640 = vmul.f32 %v421, %v421
    %v641 = vmul.f32 %v422, %v422
    %v642 = vmul.f32 %v423, %v423
    %v643 = vmul.f32 %v424, %v424
    %v644 = vmul.f32 %v425, %v425
    %v645 = vmul.f32 %v426, %v426
    %v646 = vmul.f32 %v427, %v427
    %v647 = vmul.f32 %v428, %v428
    %v648 = vmul.f32 %v429, %v429
    %v649 = vmul.f32 %v430, %v430
    %v650 = vmul.f32 %v431, %v431
    %v651 = vmul.f32 %v432, %v432
    %v652 = vmul.f32 %v433, %v433
    %v653 = vmul.f32 %v434, %v434
    %v654 = vmul.f32 %v435, %v435
    %v655 = vmul.f32 %v436, %v436
    %v656 = vmul.f32 %v437, %v437
    %v657 = vmul.f32 %v438, %v438
    %v658 = vmul.f32 %v439, %v439
    %v659 = vmul.f32 %v440, %v440
    %v660 = vmul.f32 %v441, %v441
    %v661 = vmul.f32 %v442, %v442
    %v662 = vmul.f32 %v443, %v443
    %v663 = vmul.f32 %v444, %v444
    %v664 = vmul.f32 %v445, %v445
    %v665 = vmul.f32 %v446, %v446
    %v666 = vadd.f32 %v594, %v596
    %v667 = vadd.f32 %v666, %v598
    %v668 = vadd.f32 %v667, %v600
    %v669 = vadd.f32 %v668, %v602
    %v670 = vadd.f32 %v669, %v604
    %v671 = vadd.f32 %v670, %v606
    %v672 = vadd.f32 %v671, %v608
    %v673 = vadd.f32 %v672, %v610
    %v674 = vadd.f32 %v673, %v612
    %v675 = vadd.f32 %v674, %v614
    %v676 = vadd.f32 %v675, %v616
    %v677 = vadd.f32 %v676, %v618
    %v678 = vadd.f32 %v677, %v620
    %v679 = vadd.f32 %v678, %v622
    %v680 = vadd.f32 %v679, %v624
    %v681 = vadd.f32 %v680, %v626
    %v682 = vadd.f32 %v681, %v628
    %v683 = vadd.f32 %v682, %v630
    %v684 = vadd.f32 %v683, %v632
    %v685 = vadd.f32 %v684, %v634
    %v686 = vadd.f32 %v685, %v636
    %v687 = vadd.f32 %v686, %v638
    %v688 = vadd.f32 %v687, %v640
    %v689 = vadd.f32 %v688, %v642
    %v690 = vadd.f32 %v689, %v644
    %v691 = vadd.f32 %v690, %v646
    %v692 = vadd.f32 %v691, %v648
    %v693 = vadd.f32 %v692, %v650
    %v694 = vadd.f32 %v693, %v652
    %v695 = vadd.f32 %v694, %v654
    %v696 = vadd.f32 %v695, %v656
    %v697 = vadd.f32 %v696, %v658
    %v698 = vadd.f32 %v697, %v660
    %v699 = vadd.f32 %v698, %v662
    %v700 = vadd.f32 %v699, %v664
    %v701 = vadd.f32 %v595, %v597
    %v702 = vadd.f32 %v701, %v599
    %v703 = vadd.f32 %v702, %v601
    %v704 = vadd.f32 %v703, %v603
    %v705 = vadd.f32 %v704, %v605
    %v706 = vadd.f32 %v705, %v607
    %v707 = vadd.f32 %v706, %v609
    %v708 = vadd.f32 %v707, %v611
    %v709 = vadd.f32 %v708, %v613
    %v710 = vadd.f32 %v709, %v615
    %v711 = vadd.f32 %v710, %v617
    %v712 = vadd.f32 %v711, %v619
    %v713 = vadd.f32 %v712, %v621
    %v714 = vadd.f32 %v713, %v623
    %v715 = vadd.f32 %v714, %v625
    %v716 = vadd.f32 %v715, %v627
    %v717 = vadd.f32 %v716, %v629
    %v718 = vadd.f32 %v717, %v631
    %v719 = vadd.f32 %v718, %v633
    %v720 = vadd.f32 %v719, %v635
    %v721 = vadd.f32 %v720, %v637
    %v722 = vadd.f32 %v721, %v639
    %v723 = vadd.f32 %v722, %v641
    %v724 = vadd.f32 %v723, %v643
    %v725 = vadd.f32 %v724, %v645
    %v726 = vadd.f32 %v725, %v647
    %v727 = vadd.f32 %v726, %v649
    %v728 = vadd.f32 %v727, %v651
    %v729 = vadd.f32 %v728, %v653
    %v730 = vadd.f32 %v729, %v655
    %v731 = vadd.f32 %v730, %v657
    %v732 = vadd.f32 %v731, %v659
    %v733 = vadd.f32 %v732, %v661
    %v734 = vadd.f32 %v733, %v663
    %v735 = vadd.f32 %v734, %v665
    %v736 = vadd.f32 %v592, %v700
    %v737 = vadd.f32 %v593, %v735
    %738 = vst [vmem:[#allocation8] sm:$0xff] %v736
    %739 = vst [vmem:[#allocation8 + $0x8] sm:$0xff] %v737
    %v740 = vld [vmem:[#allocation9] sm:$0xff]
    %v741 = vld [vmem:[#allocation9 + $0x8] sm:$0xff]
    %v742 = vadd.f32 %v520, %v522
    %v743 = vadd.f32 %v742, %v524
    %v744 = vadd.f32 %v743, %v526
    %v745 = vadd.f32 %v744, %v528
    %v746 = vadd.f32 %v745, %v530
    %v747 = vadd.f32 %v746, %v532
    %v748 = vadd.f32 %v747, %v534
    %v749 = vadd.f32 %v748, %v536
    %v750 = vadd.f32 %v749, %v538
    %v751 = vadd.f32 %v750, %v540
    %v752 = vadd.f32 %v751, %v542
    %v753 = vadd.f32 %v752, %v544
    %v754 = vadd.f32 %v753, %v546
    %v755 = vadd.f32 %v754, %v548
    %v756 = vadd.f32 %v755, %v550
    %v757 = vadd.f32 %v756, %v552
    %v758 = vadd.f32 %v757, %v554
    %v759 = vadd.f32 %v758, %v556
    %v760 = vadd.f32 %v759, %v558
    %v761 = vadd.f32 %v760, %v560
    %v762 = vadd.f32 %v761, %v562
    %v763 = vadd.f32 %v762, %v564
    %v764 = vadd.f32 %v763, %v566
    %v765 = vadd.f32 %v764, %v568
    %v766 = vadd.f32 %v765, %v570
    %v767 = vadd.f32 %v766, %v572
    %v768 = vadd.f32 %v767, %v574
    %v769 = vadd.f32 %v768, %v576
    %v770 = vadd.f32 %v769, %v578
    %v771 = vadd.f32 %v770, %v580
    %v772 = vadd.f32 %v771, %v582
    %v773 = vadd.f32 %v772, %v584
    %v774 = vadd.f32 %v773, %v586
    %v775 = vadd.f32 %v774, %v588
    %v776 = vadd.f32 %v775, %v590
    %v777 = vadd.f32 %v521, %v523
    %v778 = vadd.f32 %v777, %v525
    %v779 = vadd.f32 %v778, %v527
    %v780 = vadd.f32 %v779, %v529
    %v781 = vadd.f32 %v780, %v531
    %v782 = vadd.f32 %v781, %v533
    %v783 = vadd.f32 %v782, %v535
    %v784 = vadd.f32 %v783, %v537
    %v785 = vadd.f32 %v784, %v539
    %v786 = vadd.f32 %v785, %v541
    %v787 = vadd.f32 %v786, %v543
    %v788 = vadd.f32 %v787, %v545
    %v789 = vadd.f32 %v788, %v547
    %v790 = vadd.f32 %v789, %v549
    %v791 = vadd.f32 %v790, %v551
    %v792 = vadd.f32 %v791, %v553
    %v793 = vadd.f32 %v792, %v555
    %v794 = vadd.f32 %v793, %v557
    %v795 = vadd.f32 %v794, %v559
    %v796 = vadd.f32 %v795, %v561
    %v797 = vadd.f32 %v796, %v563
    %v798 = vadd.f32 %v797, %v565
    %v799 = vadd.f32 %v798, %v567
    %v800 = vadd.f32 %v799, %v569
    %v801 = vadd.f32 %v800, %v571
    %v802 = vadd.f32 %v801, %v573
    %v803 = vadd.f32 %v802, %v575
    %v804 = vadd.f32 %v803, %v577
    %v805 = vadd.f32 %v804, %v579
    %v806 = vadd.f32 %v805, %v581
    %v807 = vadd.f32 %v806, %v583
    %v808 = vadd.f32 %v807, %v585
    %v809 = vadd.f32 %v808, %v587
    %v810 = vadd.f32 %v809, %v589
    %v811 = vadd.f32 %v810, %v591
    %v812 = vadd.f32 %v740, %v776
    %v813 = vadd.f32 %v741, %v811
    %814 = vst [vmem:[#allocation9] sm:$0xff] %v812
    %815 = vst [vmem:[#allocation9 + $0x8] sm:$0xff] %v813
    %v816 = vld [vmem:[#allocation11] sm:$0xff]
    %v817 = vld [vmem:[#allocation11 + $0x8] sm:$0xff]
    %v818 = vmul.f32 %v520, %v520
    %v819 = vmul.f32 %v521, %v521
    %v820 = vmul.f32 %v522, %v522
    %v821 = vmul.f32 %v523, %v523
    %v822 = vmul.f32 %v524, %v524
    %v823 = vmul.f32 %v525, %v525
    %v824 = vmul.f32 %v526, %v526
    %v825 = vmul.f32 %v527, %v527
    %v826 = vmul.f32 %v528, %v528
    %v827 = vmul.f32 %v529, %v529
    %v828 = vmul.f32 %v530, %v530
    %v829 = vmul.f32 %v531, %v531
    %v830 = vmul.f32 %v532, %v532
    %v831 = vmul.f32 %v533, %v533
    %v832 = vmul.f32 %v534, %v534
    %v833 = vmul.f32 %v535, %v535
    %v834 = vmul.f32 %v536, %v536
    %v835 = vmul.f32 %v537, %v537
    %v836 = vmul.f32 %v538, %v538
    %v837 = vmul.f32 %v539, %v539
    %v838 = vmul.f32 %v540, %v540
    %v839 = vmul.f32 %v541, %v541
    %v840 = vmul.f32 %v542, %v542
    %v841 = vmul.f32 %v543, %v543
    %v842 = vmul.f32 %v544, %v544
    %v843 = vmul.f32 %v545, %v545
    %v844 = vmul.f32 %v546, %v546
    %v845 = vmul.f32 %v547, %v547
    %v846 = vmul.f32 %v548, %v548
    %v847 = vmul.f32 %v549, %v549
    %v848 = vmul.f32 %v550, %v550
    %v849 = vmul.f32 %v551, %v551
    %v850 = vmul.f32 %v552, %v552
    %v851 = vmul.f32 %v553, %v553
    %v852 = vmul.f32 %v554, %v554
    %v853 = vmul.f32 %v555, %v555
    %v854 = vmul.f32 %v556, %v556
    %v855 = vmul.f32 %v557, %v557
    %v856 = vmul.f32 %v558, %v558
    %v857 = vmul.f32 %v559, %v559
    %v858 = vmul.f32 %v560, %v560
    %v859 = vmul.f32 %v561, %v561
    %v860 = vmul.f32 %v562, %v562
    %v861 = vmul.f32 %v563, %v563
    %v862 = vmul.f32 %v564, %v564
    %v863 = vmul.f32 %v565, %v565
    %v864 = vmul.f32 %v566, %v566
    %v865 = vmul.f32 %v567, %v567
    %v866 = vmul.f32 %v568, %v568
    %v867 = vmul.f32 %v569, %v569
    %v868 = vmul.f32 %v570, %v570
    %v869 = vmul.f32 %v571, %v571
    %v870 = vmul.f32 %v572, %v572
    %v871 = vmul.f32 %v573, %v573
    %v872 = vmul.f32 %v574, %v574
    %v873 = vmul.f32 %v575, %v575
    %v874 = vmul.f32 %v576, %v576
    %v875 = vmul.f32 %v577, %v577
    %v876 = vmul.f32 %v578, %v578
    %v877 = vmul.f32 %v579, %v579
    %v878 = vmul.f32 %v580, %v580
    %v879 = vmul.f32 %v581, %v581
    %v880 = vmul.f32 %v582, %v582
    %v881 = vmul.f32 %v583, %v583
    %v882 = vmul.f32 %v584, %v584
    %v883 = vmul.f32 %v585, %v585
    %v884 = vmul.f32 %v586, %v586
    %v885 = vmul.f32 %v587, %v587
    %v886 = vmul.f32 %v588, %v588
    %v887 = vmul.f32 %v589, %v589
    %v888 = vmul.f32 %v590, %v590
    %v889 = vmul.f32 %v591, %v591
    %v890 = vadd.f32 %v818, %v820
    %v891 = vadd.f32 %v890, %v822
    %v892 = vadd.f32 %v891, %v824
    %v893 = vadd.f32 %v892, %v826
    %v894 = vadd.f32 %v893, %v828
    %v895 = vadd.f32 %v894, %v830
    %v896 = vadd.f32 %v895, %v832
    %v897 = vadd.f32 %v896, %v834
    %v898 = vadd.f32 %v897, %v836
    %v899 = vadd.f32 %v898, %v838
    %v900 = vadd.f32 %v899, %v840
    %v901 = vadd.f32 %v900, %v842
    %v902 = vadd.f32 %v901, %v844
    %v903 = vadd.f32 %v902, %v846
    %v904 = vadd.f32 %v903, %v848
    %v905 = vadd.f32 %v904, %v850
    %v906 = vadd.f32 %v905, %v852
    %v907 = vadd.f32 %v906, %v854
    %v908 = vadd.f32 %v907, %v856
    %v909 = vadd.f32 %v908, %v858
    %v910 = vadd.f32 %v909, %v860
    %v911 = vadd.f32 %v910, %v862
    %v912 = vadd.f32 %v911, %v864
    %v913 = vadd.f32 %v912, %v866
    %v914 = vadd.f32 %v913, %v868
    %v915 = vadd.f32 %v914, %v870
    %v916 = vadd.f32 %v915, %v872
    %v917 = vadd.f32 %v916, %v874
    %v918 = vadd.f32 %v917, %v876
    %v919 = vadd.f32 %v918, %v878
    %v920 = vadd.f32 %v919, %v880
    %v921 = vadd.f32 %v920, %v882
    %v922 = vadd.f32 %v921, %v884
    %v923 = vadd.f32 %v922, %v886
    %v924 = vadd.f32 %v923, %v888
    %v925 = vadd.f32 %v819, %v821
    %v926 = vadd.f32 %v925, %v823
    %v927 = vadd.f32 %v926, %v825
    %v928 = vadd.f32 %v927, %v827
    %v929 = vadd.f32 %v928, %v829
    %v930 = vadd.f32 %v929, %v831
    %v931 = vadd.f32 %v930, %v833
    %v932 = vadd.f32 %v931, %v835
    %v933 = vadd.f32 %v932, %v837
    %v934 = vadd.f32 %v933, %v839
    %v935 = vadd.f32 %v934, %v841
    %v936 = vadd.f32 %v935, %v843
    %v937 = vadd.f32 %v936, %v845
    %v938 = vadd.f32 %v937, %v847
    %v939 = vadd.f32 %v938, %v849
    %v940 = vadd.f32 %v939, %v851
    %v941 = vadd.f32 %v940, %v853
    %v942 = vadd.f32 %v941, %v855
    %v943 = vadd.f32 %v942, %v857
    %v944 = vadd.f32 %v943, %v859
    %v945 = vadd.f32 %v944, %v861
    %v946 = vadd.f32 %v945, %v863
    %v947 = vadd.f32 %v946, %v865
    %v948 = vadd.f32 %v947, %v867
    %v949 = vadd.f32 %v948, %v869
    %v950 = vadd.f32 %v949, %v871
    %v951 = vadd.f32 %v950, %v873
    %v952 = vadd.f32 %v951, %v875
    %v953 = vadd.f32 %v952, %v877
    %v954 = vadd.f32 %v953, %v879
    %v955 = vadd.f32 %v954, %v881
    %v956 = vadd.f32 %v955, %v883
    %v957 = vadd.f32 %v956, %v885
    %v958 = vadd.f32 %v957, %v887
    %v959 = vadd.f32 %v958, %v889
    %v960 = vadd.f32 %v816, %v924
    %v961 = vadd.f32 %v817, %v959
    %962 = vst [vmem:[#allocation11] sm:$0xff] %v960
    %963 = vst [vmem:[#allocation11 + $0x8] sm:$0xff] %v961
    // Predicated region
    $region26: #{tpu_custom_call.1} parent=1 // pred_check
      _
    $region27: #{tpu_custom_call.1} parent=1 // pred_check_branch
      %965 = sbr.rel (0) target = $region29
    $region28: #{tpu_custom_call.1} parent=1 // pred_region
      %967 = vsyncadd [#allocation5], 0
      %s968 = sshll.u32 [#allocation8], 4
      %s969 = int_to_ptr.vmem [resolvable:$true] %s968
      %s970 = sshll.u32 %s3, 4
      %s971 = int_to_ptr.hbm [resolvable:$true] %s970
      %976 = dma.vmem_to_hbm [thread:$0]  %s969, 256, %s971, [#allocation5], 128, 128, 8
    $region29: #{tpu_custom_call.1} parent=1 // pred_fallthru
      _
    // Predicated region
    $region30: #{tpu_custom_call.1} parent=1 // pred_check
      _
    $region31: #{tpu_custom_call.1} parent=1 // pred_check_branch
      %978 = sbr.rel (0) target = $region33
    $region32: #{tpu_custom_call.1} parent=1 // pred_region
      %980 = vsyncadd [#allocation10], 0
      %s981 = sshll.u32 [#allocation9], 4
      %s982 = int_to_ptr.vmem [resolvable:$true] %s981
      %s983 = sshll.u32 %s4, 4
      %s984 = int_to_ptr.hbm [resolvable:$true] %s983
      %989 = dma.vmem_to_hbm [thread:$0]  %s982, 256, %s984, [#allocation10], 128, 128, 8
    $region33: #{tpu_custom_call.1} parent=1 // pred_fallthru
      _
    // Predicated region
    $region34: #{tpu_custom_call.1} parent=1 // pred_check
      _
    $region35: #{tpu_custom_call.1} parent=1 // pred_check_branch
      %991 = sbr.rel (0) target = $region37
    $region36: #{tpu_custom_call.1} parent=1 // pred_region
      %993 = vsyncadd [#allocation10], 0
      %s994 = sshll.u32 [#allocation11], 4
      %s995 = int_to_ptr.vmem [resolvable:$true] %s994
      %s996 = sshll.u32 %s5, 4
      %s997 = int_to_ptr.hbm [resolvable:$true] %s996
      %1002 = dma.vmem_to_hbm [thread:$0]  %s995, 256, %s997, [#allocation10], 128, 128, 8
    $region37: #{tpu_custom_call.1} parent=1 // pred_fallthru
      _
    // Predicated region
    $region38: #{tpu_custom_call.1} parent=1 // pred_check
      _
    $region39: #{tpu_custom_call.1} parent=1 // pred_check_branch
      %1004 = sbr.rel (0) target = $region41
    $region40: #{tpu_custom_call.1} parent=1 // pred_region
      %1006 = dma.done [#allocation5], 256
    $region41: #{tpu_custom_call.1} parent=1 // pred_fallthru
      _
    // Predicated region
    $region42: #{tpu_custom_call.1} parent=1 // pred_check
      _
    $region43: #{tpu_custom_call.1} parent=1 // pred_check_branch
      %1008 = sbr.rel (0) target = $region45
    $region44: #{tpu_custom_call.1} parent=1 // pred_region
      %1010 = dma.done [#allocation10], 256
    $region45: #{tpu_custom_call.1} parent=1 // pred_fallthru
      _
    // Predicated region
    $region46: #{tpu_custom_call.1} parent=1 // pred_check
      _
    $region47: #{tpu_custom_call.1} parent=1 // pred_check_branch
      %1012 = sbr.rel (0) target = $region49
    $region48: #{tpu_custom_call.1} parent=1 // pred_region
      %1014 = dma.done [#allocation10], 256
    $region49: #{tpu_custom_call.1} parent=1 // pred_fallthru
      _
    %1015 = vsyncpa [#allocation4], 1
    %1016 = vsyncpa [#allocation7], 1
    %1017 = vsyncpa [#allocation5], 1
    %1018 = vsyncpa [#allocation10], 1

</llo_original>
